<compile_context>
chip_gen: v5e
topology: v5e:2x2
jax: 0.10.0
libtpu: 0.0.40
codegen_flags: <defaults>
</compile_context>

<pallas_src>
import functools

import jax
import jax.numpy as jnp
from jax import lax
from jax.experimental import pallas as pl
from jax.experimental.pallas import tpu as pltpu

EPS = 1e-5


def basic_block_kernel(x_ref, m_ref, w1_ref, g1_ref, b1_ref, w2_ref, g2_ref,
                       b2_ref, out_ref, *, shifts):
    x = x_ref[...]          # (Cp, N), lane-dense activation
    masks = m_ref[...]      # (16, N); rows 0..8 are the 3x3 tap validity masks

    def conv3x3(v, w_ref):
        # Build im2col slab (9*Cp, N) via XLU rolls; one MXU matmul.
        cols = []
        for t, s in enumerate(shifts):
            r = pltpu.roll(v, shift=s, axis=1) if s else v
            if t != 4:                       # center tap is always in-image
                r = r * masks[t:t + 1, :]    # zero the out-of-image taps
            cols.append(r)
        slab = jnp.concatenate(cols, axis=0)            # (9*Cp, N)
        return jnp.dot(w_ref[...], slab, preferred_element_type=jnp.float32)

    def bn(a, g_ref, b_ref):
        # Training-mode (biased) batch stats, single pass; affine folded into
        # one per-channel scale/shift -> y = a*scale + shift.
        mean = jnp.mean(a, axis=1, keepdims=True)                 # (Cp, 1)
        var = jnp.mean(a * a, axis=1, keepdims=True) - mean * mean
        scale = g_ref[...] * lax.rsqrt(var + EPS)                 # (Cp, 1)
        shift = b_ref[...] - mean * scale                         # (Cp, 1)
        return a * scale + shift

    y1 = jnp.maximum(bn(conv3x3(x, w1_ref), g1_ref, b1_ref), 0.0)
    y2 = bn(conv3x3(y1, w2_ref), g2_ref, b2_ref)
    out_ref[...] = jnp.maximum(y2 + x, 0.0)    # residual add + final ReLU


def basic_block(x_nchw, w1, g1, b1, w2, g2, b2):
    """x_nchw: [B, C, H, W]; w1/w2: [Cout, Cin, 3, 3] (PyTorch conv layout)."""
    B, C, H, W = x_nchw.shape
    Cp = ((C + 7) // 8) * 8                    # sublane-aligned channels
    N = B * H * W                              # lane-dense spatial axis
    HW = H * W

    # Activation: NCHW -> (C, B*H*W), pad channels to Cp with zero rows.
    x = jnp.transpose(x_nchw, (1, 0, 2, 3)).reshape(C, N).astype(jnp.float32)
    x = jnp.pad(x, ((0, Cp - C), (0, 0)))

    # Per-tap roll shifts (static) and validity masks (precomputed, shared by
    # both convs).  result[n] = x[(n - shift) mod N] must equal x[n + dh*W+dw].
    idx = jnp.arange(N, dtype=jnp.int32)
    hh = (idx % HW) // W
    ww = idx % W
    shifts = []
    mask_rows = []
    for dh in (-1, 0, 1):
        for dw in (-1, 0, 1):
            shifts.append((-(dh * W + dw)) % N)
            valid = ((hh + dh >= 0) & (hh + dh < H) &
                     (ww + dw >= 0) & (ww + dw < W))
            mask_rows.append(valid.astype(jnp.float32))
    masks = jnp.stack(mask_rows, axis=0)                     # (9, N)
    masks = jnp.pad(masks, ((0, 16 - 9), (0, 0)))            # (16, N) aligned

    # Weights: (Cout, Cin, kh, kw) -> single lane-dense slab (Cp, 9*Cp),
    # column index = (kh*3+kw)*Cp + ci  (matches im2col row order in-kernel).
    def prep_w(w):
        wt = jnp.transpose(w, (0, 2, 3, 1)).astype(jnp.float32)   # (Co,3,3,Ci)
        wt = jnp.pad(wt, ((0, Cp - C), (0, 0), (0, 0), (0, Cp - C)))
        return wt.reshape(Cp, 9 * Cp)

    def prep_v(v):
        return jnp.pad(v.astype(jnp.float32), (0, Cp - C)).reshape(Cp, 1)

    w1k, w2k = prep_w(w1), prep_w(w2)
    g1p, b1p = prep_v(g1), prep_v(b1)
    g2p, b2p = prep_v(g2), prep_v(b2)

    kernel = functools.partial(basic_block_kernel, shifts=tuple(shifts))

    out = pl.pallas_call(
        kernel,
        out_shape=jax.ShapeDtypeStruct((Cp, N), jnp.float32),
        grid_spec=pltpu.PrefetchScalarGridSpec(
            num_scalar_prefetch=0,
            grid=(1,),
            in_specs=[
                pl.BlockSpec((Cp, N), lambda i: (0, 0)),        # x
                pl.BlockSpec((16, N), lambda i: (0, 0)),        # tap masks
                pl.BlockSpec((Cp, 9 * Cp), lambda i: (0, 0)),   # w1 slab
                pl.BlockSpec((Cp, 1), lambda i: (0, 0)),        # gamma1
                pl.BlockSpec((Cp, 1), lambda i: (0, 0)),        # beta1
                pl.BlockSpec((Cp, 9 * Cp), lambda i: (0, 0)),   # w2 slab
                pl.BlockSpec((Cp, 1), lambda i: (0, 0)),        # gamma2
                pl.BlockSpec((Cp, 1), lambda i: (0, 0)),        # beta2
            ],
            out_specs=pl.BlockSpec((Cp, N), lambda i: (0, 0)),
        ),
        compiler_params=pltpu.CompilerParams(
            dimension_semantics=("arbitrary",)),
    )(x, masks, w1k, g1p, b1p, w2k, g2p, b2p)

    out = out[:C].reshape(C, B, H, W)
    return jnp.transpose(out, (1, 0, 2, 3))    # back to NCHW


# ---------------- pure-JAX reference (for verification) ----------------
def _ref_basic_block(x, w1, g1, b1, w2, g2, b2):
    def conv(x, w):
        return lax.conv_general_dilated(
            x, w, window_strides=(1, 1), padding=((1, 1), (1, 1)),
            dimension_numbers=('NCHW', 'OIHW', 'NCHW'))

    def bn(x, g, b):
        mean = jnp.mean(x, axis=(0, 2, 3), keepdims=True)
        var = jnp.mean((x - mean) ** 2, axis=(0, 2, 3), keepdims=True)
        return (x - mean) * lax.rsqrt(var + EPS) * g.reshape(1, -1, 1, 1) \
            + b.reshape(1, -1, 1, 1)

    out = jnp.maximum(bn(conv(x, w1), g1, b1), 0.0)
    out = bn(conv(out, w2), g2, b2) + x
    return jnp.maximum(out, 0.0)


if __name__ == "__main__":
    B, C, H, W = 2, 4, 16, 16  # inplanes = planes = 4, stride = 1
    key = jax.random.PRNGKey(0)
    kx, kw1, kw2, kg1, kb1, kg2, kb2 = jax.random.split(key, 7)

    x = jax.random.normal(kx, (B, C, H, W), jnp.float32)
    w1 = jax.random.normal(kw1, (C, C, 3, 3), jnp.float32) * 0.1
    w2 = jax.random.normal(kw2, (C, C, 3, 3), jnp.float32) * 0.1
    g1 = 1.0 + 0.1 * jax.random.normal(kg1, (C,), jnp.float32)
    b1 = 0.1 * jax.random.normal(kb1, (C,), jnp.float32)
    g2 = 1.0 + 0.1 * jax.random.normal(kg2, (C,), jnp.float32)
    b2 = 0.1 * jax.random.normal(kb2, (C,), jnp.float32)

    out = basic_block(x, w1, g1, b1, w2, g2, b2)
    jax.block_until_ready(out)

    ref = _ref_basic_block(x, w1, g1, b1, w2, g2, b2)
    assert out.shape == (B, C, H, W)
    assert jnp.allclose(out, ref, atol=1e-3, rtol=1e-3), "mismatch vs reference"

    print("KERNEL_OK")
</pallas_src>

<mosaic_0001>
module attributes {stable_mosaic.version = 11 : i64} {
  func.func @basic_block_kernel(%arg0: i32, %arg1: memref<8x512xf32, #tpu.memory_space<vmem>>, %arg2: memref<16x512xf32, #tpu.memory_space<vmem>>, %arg3: memref<8x72xf32, #tpu.memory_space<vmem>>, %arg4: memref<8x1xf32, #tpu.memory_space<vmem>>, %arg5: memref<8x1xf32, #tpu.memory_space<vmem>>, %arg6: memref<8x72xf32, #tpu.memory_space<vmem>>, %arg7: memref<8x1xf32, #tpu.memory_space<vmem>>, %arg8: memref<8x1xf32, #tpu.memory_space<vmem>>, %arg9: memref<8x512xf32, #tpu.memory_space<vmem>>) attributes {dimension_semantics = [#tpu.dimension_semantics<arbitrary>], iteration_bounds = array<i64: 1>, scalar_prefetch = 0 : i64, scratch_operands = 0 : i64, tpu.core_type = #tpu.core_type<tc>, window_params = [{pipeline_mode = #tpu.pipeline_mode<synchronous>, transform_indices = @transform_0, window_bounds = array<i64: 8, 512>}, {pipeline_mode = #tpu.pipeline_mode<synchronous>, transform_indices = @transform_1, window_bounds = array<i64: 16, 512>}, {pipeline_mode = #tpu.pipeline_mode<synchronous>, transform_indices = @transform_2, window_bounds = array<i64: 8, 72>}, {pipeline_mode = #tpu.pipeline_mode<synchronous>, transform_indices = @transform_3, window_bounds = array<i64: 8, 1>}, {pipeline_mode = #tpu.pipeline_mode<synchronous>, transform_indices = @transform_4, window_bounds = array<i64: 8, 1>}, {pipeline_mode = #tpu.pipeline_mode<synchronous>, transform_indices = @transform_5, window_bounds = array<i64: 8, 72>}, {pipeline_mode = #tpu.pipeline_mode<synchronous>, transform_indices = @transform_6, window_bounds = array<i64: 8, 1>}, {pipeline_mode = #tpu.pipeline_mode<synchronous>, transform_indices = @transform_7, window_bounds = array<i64: 8, 1>}, {pipeline_mode = #tpu.pipeline_mode<synchronous>, transform_indices = @transform_8, window_bounds = array<i64: 8, 512>}]} {
    %c0 = arith.constant 0 : index
    %c0_0 = arith.constant 0 : index
    %0 = vector.load %arg1[%c0, %c0_0] : memref<8x512xf32, #tpu.memory_space<vmem>>, vector<8x512xf32>
    %c0_1 = arith.constant 0 : index
    %c0_2 = arith.constant 0 : index
    %1 = vector.load %arg2[%c0_1, %c0_2] : memref<16x512xf32, #tpu.memory_space<vmem>>, vector<16x512xf32>
    %c17_i32 = arith.constant 17 : i32
    %2 = tpu.dynamic_rotate %0 by %c17_i32 dim 1 : vector<8x512xf32>, i32 -> vector<8x512xf32>
    %3 = vector.extract_strided_slice %1 {offsets = [0, 0], sizes = [1, 512], strides = [1, 1]} : vector<16x512xf32> to vector<1x512xf32>
    %4 = vector.broadcast %3 : vector<1x512xf32> to vector<8x512xf32>
    %5 = arith.mulf %2, %4 : vector<8x512xf32>
    %c16_i32 = arith.constant 16 : i32
    %6 = tpu.dynamic_rotate %0 by %c16_i32 dim 1 : vector<8x512xf32>, i32 -> vector<8x512xf32>
    %7 = vector.extract_strided_slice %1 {offsets = [1, 0], sizes = [1, 512], strides = [1, 1]} : vector<16x512xf32> to vector<1x512xf32>
    %8 = vector.broadcast %7 : vector<1x512xf32> to vector<8x512xf32>
    %9 = arith.mulf %6, %8 : vector<8x512xf32>
    %c15_i32 = arith.constant 15 : i32
    %10 = tpu.dynamic_rotate %0 by %c15_i32 dim 1 : vector<8x512xf32>, i32 -> vector<8x512xf32>
    %11 = vector.extract_strided_slice %1 {offsets = [2, 0], sizes = [1, 512], strides = [1, 1]} : vector<16x512xf32> to vector<1x512xf32>
    %12 = vector.broadcast %11 : vector<1x512xf32> to vector<8x512xf32>
    %13 = arith.mulf %10, %12 : vector<8x512xf32>
    %c1_i32 = arith.constant 1 : i32
    %14 = tpu.dynamic_rotate %0 by %c1_i32 dim 1 : vector<8x512xf32>, i32 -> vector<8x512xf32>
    %15 = vector.extract_strided_slice %1 {offsets = [3, 0], sizes = [1, 512], strides = [1, 1]} : vector<16x512xf32> to vector<1x512xf32>
    %16 = vector.broadcast %15 : vector<1x512xf32> to vector<8x512xf32>
    %17 = arith.mulf %14, %16 : vector<8x512xf32>
    %c511_i32 = arith.constant 511 : i32
    %18 = tpu.dynamic_rotate %0 by %c511_i32 dim 1 : vector<8x512xf32>, i32 -> vector<8x512xf32>
    %19 = vector.extract_strided_slice %1 {offsets = [5, 0], sizes = [1, 512], strides = [1, 1]} : vector<16x512xf32> to vector<1x512xf32>
    %20 = vector.broadcast %19 : vector<1x512xf32> to vector<8x512xf32>
    %21 = arith.mulf %18, %20 : vector<8x512xf32>
    %c497_i32 = arith.constant 497 : i32
    %22 = tpu.dynamic_rotate %0 by %c497_i32 dim 1 : vector<8x512xf32>, i32 -> vector<8x512xf32>
    %23 = vector.extract_strided_slice %1 {offsets = [6, 0], sizes = [1, 512], strides = [1, 1]} : vector<16x512xf32> to vector<1x512xf32>
    %24 = vector.broadcast %23 : vector<1x512xf32> to vector<8x512xf32>
    %25 = arith.mulf %22, %24 : vector<8x512xf32>
    %c496_i32 = arith.constant 496 : i32
    %26 = tpu.dynamic_rotate %0 by %c496_i32 dim 1 : vector<8x512xf32>, i32 -> vector<8x512xf32>
    %27 = vector.extract_strided_slice %1 {offsets = [7, 0], sizes = [1, 512], strides = [1, 1]} : vector<16x512xf32> to vector<1x512xf32>
    %28 = vector.broadcast %27 : vector<1x512xf32> to vector<8x512xf32>
    %29 = arith.mulf %26, %28 : vector<8x512xf32>
    %c495_i32 = arith.constant 495 : i32
    %30 = tpu.dynamic_rotate %0 by %c495_i32 dim 1 : vector<8x512xf32>, i32 -> vector<8x512xf32>
    %31 = vector.extract_strided_slice %1 {offsets = [8, 0], sizes = [1, 512], strides = [1, 1]} : vector<16x512xf32> to vector<1x512xf32>
    %32 = vector.broadcast %31 : vector<1x512xf32> to vector<8x512xf32>
    %33 = arith.mulf %30, %32 : vector<8x512xf32>
    %34 = tpu.concatenate %5, %9, %13, %17, %0, %21, %25, %29, %33 in 0 : vector<8x512xf32>, vector<8x512xf32>, vector<8x512xf32>, vector<8x512xf32>, vector<8x512xf32>, vector<8x512xf32>, vector<8x512xf32>, vector<8x512xf32>, vector<8x512xf32> -> vector<72x512xf32>
    %c0_3 = arith.constant 0 : index
    %c0_4 = arith.constant 0 : index
    %35 = vector.load %arg3[%c0_3, %c0_4] : memref<8x72xf32, #tpu.memory_space<vmem>>, vector<8x72xf32>
    %cst = arith.constant dense<0.000000e+00> : vector<8x512xf32>
    %36 = tpu.matmul %35, %34, %cst {dimension_numbers = #tpu.dot_dimension_numbers<[1], [0], [0], [1], [0, 0, 1, 1], [], []>} : vector<8x72xf32>, vector<72x512xf32>, vector<8x512xf32> -> vector<8x512xf32>
    %cst_5 = arith.constant dense<0.000000e+00> : vector<8xf32>
    %37 = vector.multi_reduction <add>, %36, %cst_5 [1] : vector<8x512xf32> to vector<8xf32>
    %38 = vector.shape_cast %37 : vector<8xf32> to vector<8x1xf32>
    %cst_6 = arith.constant 5.120000e+02 : f32
    %39 = vector.broadcast %cst_6 : f32 to vector<8x1xf32>
    %40 = arith.divf %38, %39 : vector<8x1xf32>
    %41 = arith.mulf %36, %36 : vector<8x512xf32>
    %cst_7 = arith.constant dense<0.000000e+00> : vector<8xf32>
    %42 = vector.multi_reduction <add>, %41, %cst_7 [1] : vector<8x512xf32> to vector<8xf32>
    %43 = vector.shape_cast %42 : vector<8xf32> to vector<8x1xf32>
    %cst_8 = arith.constant 5.120000e+02 : f32
    %44 = vector.broadcast %cst_8 : f32 to vector<8x1xf32>
    %45 = arith.divf %43, %44 : vector<8x1xf32>
    %46 = arith.mulf %40, %40 : vector<8x1xf32>
    %47 = arith.subf %45, %46 : vector<8x1xf32>
    %c0_9 = arith.constant 0 : index
    %c0_10 = arith.constant 0 : index
    %48 = vector.load %arg4[%c0_9, %c0_10] : memref<8x1xf32, #tpu.memory_space<vmem>>, vector<8x1xf32>
    %cst_11 = arith.constant 9.99999974E-6 : f32
    %49 = vector.broadcast %cst_11 : f32 to vector<8x1xf32>
    %50 = arith.addf %47, %49 : vector<8x1xf32>
    %51 = math.rsqrt %50 : vector<8x1xf32>
    %52 = arith.mulf %48, %51 : vector<8x1xf32>
    %c0_12 = arith.constant 0 : index
    %c0_13 = arith.constant 0 : index
    %53 = vector.load %arg5[%c0_12, %c0_13] : memref<8x1xf32, #tpu.memory_space<vmem>>, vector<8x1xf32>
    %54 = arith.mulf %40, %52 : vector<8x1xf32>
    %55 = arith.subf %53, %54 : vector<8x1xf32>
    %56 = vector.broadcast %52 : vector<8x1xf32> to vector<8x512xf32>
    %57 = arith.mulf %36, %56 : vector<8x512xf32>
    %58 = vector.broadcast %55 : vector<8x1xf32> to vector<8x512xf32>
    %59 = arith.addf %57, %58 : vector<8x512xf32>
    %cst_14 = arith.constant 0.000000e+00 : f32
    %60 = vector.broadcast %cst_14 : f32 to vector<8x512xf32>
    %61 = arith.maximumf %59, %60 : vector<8x512xf32>
    %c17_i32_15 = arith.constant 17 : i32
    %62 = tpu.dynamic_rotate %61 by %c17_i32_15 dim 1 : vector<8x512xf32>, i32 -> vector<8x512xf32>
    %63 = vector.extract_strided_slice %1 {offsets = [0, 0], sizes = [1, 512], strides = [1, 1]} : vector<16x512xf32> to vector<1x512xf32>
    %64 = vector.broadcast %63 : vector<1x512xf32> to vector<8x512xf32>
    %65 = arith.mulf %62, %64 : vector<8x512xf32>
    %c16_i32_16 = arith.constant 16 : i32
    %66 = tpu.dynamic_rotate %61 by %c16_i32_16 dim 1 : vector<8x512xf32>, i32 -> vector<8x512xf32>
    %67 = vector.extract_strided_slice %1 {offsets = [1, 0], sizes = [1, 512], strides = [1, 1]} : vector<16x512xf32> to vector<1x512xf32>
    %68 = vector.broadcast %67 : vector<1x512xf32> to vector<8x512xf32>
    %69 = arith.mulf %66, %68 : vector<8x512xf32>
    %c15_i32_17 = arith.constant 15 : i32
    %70 = tpu.dynamic_rotate %61 by %c15_i32_17 dim 1 : vector<8x512xf32>, i32 -> vector<8x512xf32>
    %71 = vector.extract_strided_slice %1 {offsets = [2, 0], sizes = [1, 512], strides = [1, 1]} : vector<16x512xf32> to vector<1x512xf32>
    %72 = vector.broadcast %71 : vector<1x512xf32> to vector<8x512xf32>
    %73 = arith.mulf %70, %72 : vector<8x512xf32>
    %c1_i32_18 = arith.constant 1 : i32
    %74 = tpu.dynamic_rotate %61 by %c1_i32_18 dim 1 : vector<8x512xf32>, i32 -> vector<8x512xf32>
    %75 = vector.extract_strided_slice %1 {offsets = [3, 0], sizes = [1, 512], strides = [1, 1]} : vector<16x512xf32> to vector<1x512xf32>
    %76 = vector.broadcast %75 : vector<1x512xf32> to vector<8x512xf32>
    %77 = arith.mulf %74, %76 : vector<8x512xf32>
    %c511_i32_19 = arith.constant 511 : i32
    %78 = tpu.dynamic_rotate %61 by %c511_i32_19 dim 1 : vector<8x512xf32>, i32 -> vector<8x512xf32>
    %79 = vector.extract_strided_slice %1 {offsets = [5, 0], sizes = [1, 512], strides = [1, 1]} : vector<16x512xf32> to vector<1x512xf32>
    %80 = vector.broadcast %79 : vector<1x512xf32> to vector<8x512xf32>
    %81 = arith.mulf %78, %80 : vector<8x512xf32>
    %c497_i32_20 = arith.constant 497 : i32
    %82 = tpu.dynamic_rotate %61 by %c497_i32_20 dim 1 : vector<8x512xf32>, i32 -> vector<8x512xf32>
    %83 = vector.extract_strided_slice %1 {offsets = [6, 0], sizes = [1, 512], strides = [1, 1]} : vector<16x512xf32> to vector<1x512xf32>
    %84 = vector.broadcast %83 : vector<1x512xf32> to vector<8x512xf32>
    %85 = arith.mulf %82, %84 : vector<8x512xf32>
    %c496_i32_21 = arith.constant 496 : i32
    %86 = tpu.dynamic_rotate %61 by %c496_i32_21 dim 1 : vector<8x512xf32>, i32 -> vector<8x512xf32>
    %87 = vector.extract_strided_slice %1 {offsets = [7, 0], sizes = [1, 512], strides = [1, 1]} : vector<16x512xf32> to vector<1x512xf32>
    %88 = vector.broadcast %87 : vector<1x512xf32> to vector<8x512xf32>
    %89 = arith.mulf %86, %88 : vector<8x512xf32>
    %c495_i32_22 = arith.constant 495 : i32
    %90 = tpu.dynamic_rotate %61 by %c495_i32_22 dim 1 : vector<8x512xf32>, i32 -> vector<8x512xf32>
    %91 = vector.extract_strided_slice %1 {offsets = [8, 0], sizes = [1, 512], strides = [1, 1]} : vector<16x512xf32> to vector<1x512xf32>
    %92 = vector.broadcast %91 : vector<1x512xf32> to vector<8x512xf32>
    %93 = arith.mulf %90, %92 : vector<8x512xf32>
    %94 = tpu.concatenate %65, %69, %73, %77, %61, %81, %85, %89, %93 in 0 : vector<8x512xf32>, vector<8x512xf32>, vector<8x512xf32>, vector<8x512xf32>, vector<8x512xf32>, vector<8x512xf32>, vector<8x512xf32>, vector<8x512xf32>, vector<8x512xf32> -> vector<72x512xf32>
    %c0_23 = arith.constant 0 : index
    %c0_24 = arith.constant 0 : index
    %95 = vector.load %arg6[%c0_23, %c0_24] : memref<8x72xf32, #tpu.memory_space<vmem>>, vector<8x72xf32>
    %cst_25 = arith.constant dense<0.000000e+00> : vector<8x512xf32>
    %96 = tpu.matmul %95, %94, %cst_25 {dimension_numbers = #tpu.dot_dimension_numbers<[1], [0], [0], [1], [0, 0, 1, 1], [], []>} : vector<8x72xf32>, vector<72x512xf32>, vector<8x512xf32> -> vector<8x512xf32>
    %cst_26 = arith.constant dense<0.000000e+00> : vector<8xf32>
    %97 = vector.multi_reduction <add>, %96, %cst_26 [1] : vector<8x512xf32> to vector<8xf32>
    %98 = vector.shape_cast %97 : vector<8xf32> to vector<8x1xf32>
    %cst_27 = arith.constant 5.120000e+02 : f32
    %99 = vector.broadcast %cst_27 : f32 to vector<8x1xf32>
    %100 = arith.divf %98, %99 : vector<8x1xf32>
    %101 = arith.mulf %96, %96 : vector<8x512xf32>
    %cst_28 = arith.constant dense<0.000000e+00> : vector<8xf32>
    %102 = vector.multi_reduction <add>, %101, %cst_28 [1] : vector<8x512xf32> to vector<8xf32>
    %103 = vector.shape_cast %102 : vector<8xf32> to vector<8x1xf32>
    %cst_29 = arith.constant 5.120000e+02 : f32
    %104 = vector.broadcast %cst_29 : f32 to vector<8x1xf32>
    %105 = arith.divf %103, %104 : vector<8x1xf32>
    %106 = arith.mulf %100, %100 : vector<8x1xf32>
    %107 = arith.subf %105, %106 : vector<8x1xf32>
    %c0_30 = arith.constant 0 : index
    %c0_31 = arith.constant 0 : index
    %108 = vector.load %arg7[%c0_30, %c0_31] : memref<8x1xf32, #tpu.memory_space<vmem>>, vector<8x1xf32>
    %cst_32 = arith.constant 9.99999974E-6 : f32
    %109 = vector.broadcast %cst_32 : f32 to vector<8x1xf32>
    %110 = arith.addf %107, %109 : vector<8x1xf32>
    %111 = math.rsqrt %110 : vector<8x1xf32>
    %112 = arith.mulf %108, %111 : vector<8x1xf32>
    %c0_33 = arith.constant 0 : index
    %c0_34 = arith.constant 0 : index
    %113 = vector.load %arg8[%c0_33, %c0_34] : memref<8x1xf32, #tpu.memory_space<vmem>>, vector<8x1xf32>
    %114 = arith.mulf %100, %112 : vector<8x1xf32>
    %115 = arith.subf %113, %114 : vector<8x1xf32>
    %116 = vector.broadcast %112 : vector<8x1xf32> to vector<8x512xf32>
    %117 = arith.mulf %96, %116 : vector<8x512xf32>
    %118 = vector.broadcast %115 : vector<8x1xf32> to vector<8x512xf32>
    %119 = arith.addf %117, %118 : vector<8x512xf32>
    %120 = arith.addf %119, %0 : vector<8x512xf32>
    %cst_35 = arith.constant 0.000000e+00 : f32
    %121 = vector.broadcast %cst_35 : f32 to vector<8x512xf32>
    %122 = arith.maximumf %120, %121 : vector<8x512xf32>
    %c0_36 = arith.constant 0 : index
    %c0_37 = arith.constant 0 : index
    %123 = vector.load %arg9[%c0_36, %c0_37] : memref<8x512xf32, #tpu.memory_space<vmem>>, vector<8x512xf32>
    tpu.vector_store %arg9[%c0_36, %c0_37], %122 {strides = array<i32>} : memref<8x512xf32, #tpu.memory_space<vmem>>, vector<8x512xf32>,
    return
  }
  func.func @transform_0(%arg0: i32) -> (i32, i32) {
    %c0_i32 = arith.constant 0 : i32
    %c0_i32_0 = arith.constant 0 : i32
    %c0_i32_1 = arith.constant 0 : i32
    return %c0_i32, %c0_i32_0 : i32, i32
  }
  func.func @transform_1(%arg0: i32) -> (i32, i32) {
    %c0_i32 = arith.constant 0 : i32
    %c0_i32_0 = arith.constant 0 : i32
    %c0_i32_1 = arith.constant 0 : i32
    return %c0_i32, %c0_i32_0 : i32, i32
  }
  func.func @transform_2(%arg0: i32) -> (i32, i32) {
    %c0_i32 = arith.constant 0 : i32
    %c0_i32_0 = arith.constant 0 : i32
    %c0_i32_1 = arith.constant 0 : i32
    return %c0_i32, %c0_i32_0 : i32, i32
  }
  func.func @transform_3(%arg0: i32) -> (i32, i32) {
    %c0_i32 = arith.constant 0 : i32
    %c0_i32_0 = arith.constant 0 : i32
    %c0_i32_1 = arith.constant 0 : i32
    return %c0_i32, %c0_i32_0 : i32, i32
  }
  func.func @transform_4(%arg0: i32) -> (i32, i32) {
    %c0_i32 = arith.constant 0 : i32
    %c0_i32_0 = arith.constant 0 : i32
    %c0_i32_1 = arith.constant 0 : i32
    return %c0_i32, %c0_i32_0 : i32, i32
  }
  func.func @transform_5(%arg0: i32) -> (i32, i32) {
    %c0_i32 = arith.constant 0 : i32
    %c0_i32_0 = arith.constant 0 : i32
    %c0_i32_1 = arith.constant 0 : i32
    return %c0_i32, %c0_i32_0 : i32, i32
  }
  func.func @transform_6(%arg0: i32) -> (i32, i32) {
    %c0_i32 = arith.constant 0 : i32
    %c0_i32_0 = arith.constant 0 : i32
    %c0_i32_1 = arith.constant 0 : i32
    return %c0_i32, %c0_i32_0 : i32, i32
  }
  func.func @transform_7(%arg0: i32) -> (i32, i32) {
    %c0_i32 = arith.constant 0 : i32
    %c0_i32_0 = arith.constant 0 : i32
    %c0_i32_1 = arith.constant 0 : i32
    return %c0_i32, %c0_i32_0 : i32, i32
  }
  func.func @transform_8(%arg0: i32) -> (i32, i32) {
    %c0_i32 = arith.constant 0 : i32
    %c0_i32_0 = arith.constant 0 : i32
    %c0_i32_1 = arith.constant 0 : i32
    return %c0_i32, %c0_i32_0 : i32, i32
  }
}

</mosaic_0001>

<llo_original>
// kernel: tpu_custom_call.1
$region0: #{tpu_custom_call.1}
  #allocation0 [shape = 'u32[]', space=smem, size = 0x4, offset = 0x4, fixed_abs, tag = 'smem constant byte address 0x4 - core index']
  #allocation1 [shape = 'u32[72,128]{1,0:T(1,128)}', space=vmem, size = 0x9000, scoped, tag = 'internal scratch']
  %s0 = inlined_call_operand.hbm [shape: f32[8,512], index: 0, kind: input, shape index: {}]
  %s1 = inlined_call_operand.hbm [shape: f32[16,512], index: 1, kind: input, shape index: {}]
  %s2 = inlined_call_operand.vmem [shape: f32[8,72], index: 2, kind: input, shape index: {}]
  %s3 = inlined_call_operand.vmem [shape: f32[8,1], index: 3, kind: input, shape index: {}]
  %s4 = inlined_call_operand.vmem [shape: f32[8,1], index: 4, kind: input, shape index: {}]
  %s5 = inlined_call_operand.vmem [shape: f32[8,72], index: 5, kind: input, shape index: {}]
  %s6 = inlined_call_operand.vmem [shape: f32[8,1], index: 6, kind: input, shape index: {}]
  %s7 = inlined_call_operand.vmem [shape: f32[8,1], index: 7, kind: input, shape index: {}]
  %s8 = inlined_call_operand.hbm [shape: f32[8,512], index: 8, kind: output, shape index: {}]
  %s9 = sld [smem:[#allocation0]]
  $region50: #{tpu_custom_call.1} parent=0
    _
  %s11 = ssub.s32 1, %s9
  %s12 = scalar_select 0, %s11, %s9
  $region1: #{tpu_custom_call.1} parent=0
    #allocation2 [shape = 'u8[16384]{0}', space=vmem, size = 0x4000, scoped, tag = 'input window, operand 0, single buffered']
    #allocation3 [shape = 's32[1]{0}', space=sflag, size = 0x4, scoped, tag = 'scoped memory for tpu_custom_call.1']
    #allocation4 [shape = 's32[1]{0}', space=sflag, size = 0x4, scoped, tag = 'scoped memory for tpu_custom_call.1']
    #allocation5 [shape = 'u8[32768]{0}', space=vmem, size = 0x8000, scoped, tag = 'input window, operand 1, single buffered']
    #allocation6 [shape = 's32[1]{0}', space=sflag, size = 0x4, scoped, tag = 'scoped memory for tpu_custom_call.1']
    #allocation7 [shape = 'u8[16384]{0}', space=vmem, size = 0x4000, scoped, tag = 'output window, operand 0, single buffered']
    %13 = vsyncpa [#allocation3], 0
    %14 = vsyncpa [#allocation6], 0
    %15 = vsyncpa [#allocation4], 0
    // Predicated region
    $region2: #{tpu_custom_call.1} parent=1 // pred_check
      _
    $region3: #{tpu_custom_call.1} parent=1 // pred_check_branch
      %17 = sbr.rel (0) target = $region5
    $region4: #{tpu_custom_call.1} parent=1 // pred_region
      %19 = vsyncadd [#allocation3], 0
      %s21 = sshll.u32 %s0, 4
      %s22 = int_to_ptr.hbm [resolvable:$true] %s21
      %s23 = sshll.u32 [#allocation2], 4
      %s24 = int_to_ptr.vmem [resolvable:$true] %s23
      %26 = dma.hbm_to_vmem [thread:$0]  %s22, 512, %s24, [#allocation3]
    $region5: #{tpu_custom_call.1} parent=1 // pred_fallthru
      _
    // Predicated region
    $region6: #{tpu_custom_call.1} parent=1 // pred_check
      _
    $region7: #{tpu_custom_call.1} parent=1 // pred_check_branch
      %28 = sbr.rel (0) target = $region9
    $region8: #{tpu_custom_call.1} parent=1 // pred_region
      %30 = vsyncadd [#allocation6], 0
      %s31 = sshll.u32 %s1, 4
      %s32 = int_to_ptr.hbm [resolvable:$true] %s31
      %s33 = sshll.u32 [#allocation5], 4
      %s34 = int_to_ptr.vmem [resolvable:$true] %s33
      %39 = dma.hbm_to_vmem [thread:$0]  %s32, 1024, %s34, [#allocation6], 512, 512, 32
    $region9: #{tpu_custom_call.1} parent=1 // pred_fallthru
      _
    // Predicated region
    $region10: #{tpu_custom_call.1} parent=1 // pred_check
      _
    $region11: #{tpu_custom_call.1} parent=1 // pred_check_branch
      %41 = sbr.rel (0) target = $region13
    $region12: #{tpu_custom_call.1} parent=1 // pred_region
      _
    $region13: #{tpu_custom_call.1} parent=1 // pred_fallthru
      _
    // Predicated region
    $region14: #{tpu_custom_call.1} parent=1 // pred_check
      _
    $region15: #{tpu_custom_call.1} parent=1 // pred_check_branch
      %43 = sbr.rel (0) target = $region17
    $region16: #{tpu_custom_call.1} parent=1 // pred_region
      _
    $region17: #{tpu_custom_call.1} parent=1 // pred_fallthru
      _
    // Predicated region
    $region18: #{tpu_custom_call.1} parent=1 // pred_check
      _
    $region19: #{tpu_custom_call.1} parent=1 // pred_check_branch
      %45 = sbr.rel (0) target = $region21
    $region20: #{tpu_custom_call.1} parent=1 // pred_region
      _
    $region21: #{tpu_custom_call.1} parent=1 // pred_fallthru
      _
    // Predicated region
    $region22: #{tpu_custom_call.1} parent=1 // pred_check
      _
    $region23: #{tpu_custom_call.1} parent=1 // pred_check_branch
      %47 = sbr.rel (0) target = $region25
    $region24: #{tpu_custom_call.1} parent=1 // pred_region
      _
    $region25: #{tpu_custom_call.1} parent=1 // pred_fallthru
      _
    // Predicated region
    $region26: #{tpu_custom_call.1} parent=1 // pred_check
      _
    $region27: #{tpu_custom_call.1} parent=1 // pred_check_branch
      %49 = sbr.rel (0) target = $region29
    $region28: #{tpu_custom_call.1} parent=1 // pred_region
      _
    $region29: #{tpu_custom_call.1} parent=1 // pred_fallthru
      _
    // Predicated region
    $region30: #{tpu_custom_call.1} parent=1 // pred_check
      _
    $region31: #{tpu_custom_call.1} parent=1 // pred_check_branch
      %51 = sbr.rel (0) target = $region33
    $region32: #{tpu_custom_call.1} parent=1 // pred_region
      _
    $region33: #{tpu_custom_call.1} parent=1 // pred_fallthru
      _
    // Predicated region
    $region34: #{tpu_custom_call.1} parent=1 // pred_check
      _
    $region35: #{tpu_custom_call.1} parent=1 // pred_check_branch
      %53 = sbr.rel (0) target = $region37
    $region36: #{tpu_custom_call.1} parent=1 // pred_region
      %55 = dma.done [#allocation3], 512
    $region37: #{tpu_custom_call.1} parent=1 // pred_fallthru
      _
    // Predicated region
    $region38: #{tpu_custom_call.1} parent=1 // pred_check
      _
    $region39: #{tpu_custom_call.1} parent=1 // pred_check_branch
      %57 = sbr.rel (0) target = $region41
    $region40: #{tpu_custom_call.1} parent=1 // pred_region
      %59 = dma.done [#allocation6], 1024
    $region41: #{tpu_custom_call.1} parent=1 // pred_fallthru
      _
    %v60 = vld [vmem:[#allocation2] sm:$0xff]
    %v61 = vld [vmem:[#allocation2 + $0x8] sm:$0xff]
    %v62 = vld [vmem:[#allocation2 + $0x10] sm:$0xff]
    %v63 = vld [vmem:[#allocation2 + $0x18] sm:$0xff]
    %v64 = vld [vmem:[#allocation5] sm:$0xff]
    %v65 = vld [vmem:[#allocation5 + $0x8] sm:$0xff]
    %v66 = vld [vmem:[#allocation5 + $0x10] sm:$0xff]
    %v67 = vld [vmem:[#allocation5 + $0x18] sm:$0xff]
    %v68 = vld [vmem:[#allocation5 + $0x20] sm:$0xff]
    %v69 = vld [vmem:[#allocation5 + $0x28] sm:$0xff]
    %v70 = vld [vmem:[#allocation5 + $0x30] sm:$0xff]
    %v71 = vld [vmem:[#allocation5 + $0x38] sm:$0xff]
    %72 = vrot.lane.b32.xlu0 %v60, 17
    %v73 = vpop.permute.xlu0 %72
    %74 = vrot.lane.b32.xlu0 %v61, 17
    %v75 = vpop.permute.xlu0 %74
    %76 = vrot.lane.b32.xlu0 %v62, 17
    %v77 = vpop.permute.xlu0 %76
    %78 = vrot.lane.b32.xlu0 %v63, 17
    %v79 = vpop.permute.xlu0 %78
    %v80 = vlaneseq
    %v81 = vand.u32 %v80, 127
    %vm82 = vcmp.lt.s32.totalorder %v81, 17
    %v83 = vsel %vm82, %v77, %v79
    %v84 = vsel %vm82, %v75, %v77
    %v85 = vsel %vm82, %v73, %v75
    %v86 = vsel %vm82, %v79, %v73
    %v87 = vperm.slane %v64, 0
    %v88 = vperm.slane %v65, 0
    %v89 = vperm.slane %v66, 0
    %v90 = vperm.slane %v67, 0
    %v91 = vmul.f32 %v86, %v87
    %v92 = vmul.f32 %v85, %v88
    %v93 = vmul.f32 %v84, %v89
    %v94 = vmul.f32 %v83, %v90
    %95 = vrot.lane.b32.xlu0 %v60, 16
    %v96 = vpop.permute.xlu0 %95
    %97 = vrot.lane.b32.xlu0 %v61, 16
    %v98 = vpop.permute.xlu0 %97
    %99 = vrot.lane.b32.xlu0 %v62, 16
    %v100 = vpop.permute.xlu0 %99
    %101 = vrot.lane.b32.xlu0 %v63, 16
    %v102 = vpop.permute.xlu0 %101
    %vm103 = vcmp.lt.s32.totalorder %v81, 16
    %v104 = vsel %vm103, %v100, %v102
    %v105 = vsel %vm103, %v98, %v100
    %v106 = vsel %vm103, %v96, %v98
    %v107 = vsel %vm103, %v102, %v96
    %v108 = vperm.slane %v64, 1
    %v109 = vperm.slane %v65, 1
    %v110 = vperm.slane %v66, 1
    %v111 = vperm.slane %v67, 1
    %v112 = vmul.f32 %v107, %v108
    %v113 = vmul.f32 %v106, %v109
    %v114 = vmul.f32 %v105, %v110
    %v115 = vmul.f32 %v104, %v111
    %116 = vrot.lane.b32.xlu0 %v60, 15
    %v117 = vpop.permute.xlu0 %116
    %118 = vrot.lane.b32.xlu0 %v61, 15
    %v119 = vpop.permute.xlu0 %118
    %120 = vrot.lane.b32.xlu0 %v62, 15
    %v121 = vpop.permute.xlu0 %120
    %122 = vrot.lane.b32.xlu0 %v63, 15
    %v123 = vpop.permute.xlu0 %122
    %vm124 = vcmp.lt.s32.totalorder %v81, 15
    %v125 = vsel %vm124, %v121, %v123
    %v126 = vsel %vm124, %v119, %v121
    %v127 = vsel %vm124, %v117, %v119
    %v128 = vsel %vm124, %v123, %v117
    %v129 = vperm.slane %v64, 2
    %v130 = vperm.slane %v65, 2
    %v131 = vperm.slane %v66, 2
    %v132 = vperm.slane %v67, 2
    %v133 = vmul.f32 %v128, %v129
    %v134 = vmul.f32 %v127, %v130
    %v135 = vmul.f32 %v126, %v131
    %v136 = vmul.f32 %v125, %v132
    %137 = vrot.lane.b32.xlu0 %v60, 1
    %v138 = vpop.permute.xlu0 %137
    %139 = vrot.lane.b32.xlu0 %v61, 1
    %v140 = vpop.permute.xlu0 %139
    %141 = vrot.lane.b32.xlu0 %v62, 1
    %v142 = vpop.permute.xlu0 %141
    %143 = vrot.lane.b32.xlu0 %v63, 1
    %v144 = vpop.permute.xlu0 %143
    %vm145 = vcmp.lt.s32.totalorder %v81, 1
    %v146 = vsel %vm145, %v142, %v144
    %v147 = vsel %vm145, %v140, %v142
    %v148 = vsel %vm145, %v138, %v140
    %v149 = vsel %vm145, %v144, %v138
    %v150 = vperm.slane %v64, 3
    %v151 = vperm.slane %v65, 3
    %v152 = vperm.slane %v66, 3
    %v153 = vperm.slane %v67, 3
    %v154 = vmul.f32 %v149, %v150
    %v155 = vmul.f32 %v148, %v151
    %v156 = vmul.f32 %v147, %v152
    %v157 = vmul.f32 %v146, %v153
    %158 = vrot.lane.b32.xlu0 %v60, 127
    %v159 = vpop.permute.xlu0 %158
    %160 = vrot.lane.b32.xlu0 %v61, 127
    %v161 = vpop.permute.xlu0 %160
    %162 = vrot.lane.b32.xlu0 %v62, 127
    %v163 = vpop.permute.xlu0 %162
    %164 = vrot.lane.b32.xlu0 %v63, 127
    %v165 = vpop.permute.xlu0 %164
    %vm166 = vcmp.lt.s32.totalorder %v81, 127
    %v167 = vsel %vm166, %v163, %v165
    %v168 = vsel %vm166, %v161, %v163
    %v169 = vsel %vm166, %v159, %v161
    %v170 = vsel %vm166, %v165, %v159
    %v171 = vperm.slane %v64, 5
    %v172 = vperm.slane %v65, 5
    %v173 = vperm.slane %v66, 5
    %v174 = vperm.slane %v67, 5
    %v175 = vmul.f32 %v169, %v171
    %v176 = vmul.f32 %v168, %v172
    %v177 = vmul.f32 %v167, %v173
    %v178 = vmul.f32 %v170, %v174
    %179 = vrot.lane.b32.xlu0 %v60, 113
    %v180 = vpop.permute.xlu0 %179
    %181 = vrot.lane.b32.xlu0 %v61, 113
    %v182 = vpop.permute.xlu0 %181
    %183 = vrot.lane.b32.xlu0 %v62, 113
    %v184 = vpop.permute.xlu0 %183
    %185 = vrot.lane.b32.xlu0 %v63, 113
    %v186 = vpop.permute.xlu0 %185
    %vm187 = vcmp.lt.s32.totalorder %v81, 113
    %v188 = vsel %vm187, %v184, %v186
    %v189 = vsel %vm187, %v182, %v184
    %v190 = vsel %vm187, %v180, %v182
    %v191 = vsel %vm187, %v186, %v180
    %v192 = vperm.slane %v64, 6
    %v193 = vperm.slane %v65, 6
    %v194 = vperm.slane %v66, 6
    %v195 = vperm.slane %v67, 6
    %v196 = vmul.f32 %v190, %v192
    %v197 = vmul.f32 %v189, %v193
    %v198 = vmul.f32 %v188, %v194
    %v199 = vmul.f32 %v191, %v195
    %200 = vrot.lane.b32.xlu0 %v60, 112
    %v201 = vpop.permute.xlu0 %200
    %202 = vrot.lane.b32.xlu0 %v61, 112
    %v203 = vpop.permute.xlu0 %202
    %204 = vrot.lane.b32.xlu0 %v62, 112
    %v205 = vpop.permute.xlu0 %204
    %206 = vrot.lane.b32.xlu0 %v63, 112
    %v207 = vpop.permute.xlu0 %206
    %vm208 = vcmp.lt.s32.totalorder %v81, 112
    %v209 = vsel %vm208, %v205, %v207
    %v210 = vsel %vm208, %v203, %v205
    %v211 = vsel %vm208, %v201, %v203
    %v212 = vsel %vm208, %v207, %v201
    %v213 = vperm.slane %v64, 7
    %v214 = vperm.slane %v65, 7
    %v215 = vperm.slane %v66, 7
    %v216 = vperm.slane %v67, 7
    %v217 = vmul.f32 %v211, %v213
    %v218 = vmul.f32 %v210, %v214
    %v219 = vmul.f32 %v209, %v215
    %v220 = vmul.f32 %v212, %v216
    %221 = vrot.lane.b32.xlu0 %v60, 111
    %v222 = vpop.permute.xlu0 %221
    %223 = vrot.lane.b32.xlu0 %v61, 111
    %v224 = vpop.permute.xlu0 %223
    %225 = vrot.lane.b32.xlu0 %v62, 111
    %v226 = vpop.permute.xlu0 %225
    %227 = vrot.lane.b32.xlu0 %v63, 111
    %v228 = vpop.permute.xlu0 %227
    %vm229 = vcmp.lt.s32.totalorder %v81, 111
    %v230 = vsel %vm229, %v226, %v228
    %v231 = vsel %vm229, %v224, %v226
    %v232 = vsel %vm229, %v222, %v224
    %v233 = vsel %vm229, %v228, %v222
    %v234 = vperm.slane %v68, 0
    %v235 = vperm.slane %v69, 0
    %v236 = vperm.slane %v70, 0
    %v237 = vperm.slane %v71, 0
    %v238 = vmul.f32 %v232, %v234
    %v239 = vmul.f32 %v231, %v235
    %v240 = vmul.f32 %v230, %v236
    %v241 = vmul.f32 %v233, %v237
    %v242 = vld [vmem:[%s2] sm:$0xff]
    %vm243 = vcmask 588800
    %v245 = vsel %vm243, %v242, 0
    %247 = vmatpush.msra.mxu0 0.0
    %248 = vmatpush.msra.mxu0 0.0
    %249 = vmatpush.msra.mxu0 0.0
    %250 = vmatpush.msra.mxu0 0.0
    %251 = vmatpush.msra.mxu0 0.0
    %252 = vmatpush.msra.mxu0 0.0
    %253 = vmatpush.msra.mxu0 0.0
    %254 = vmatpush.msra.mxu0 %v238
    %255 = vmatpush.msra.mxu0 %v217
    %256 = vmatpush.msra.mxu0 %v196
    %257 = vmatpush.msra.mxu0 %v175
    %258 = vmatpush.msra.mxu0 %v60
    %259 = vmatpush.msra.mxu0 %v154
    %260 = vmatpush.msra.mxu0 %v133
    %261 = vmatpush.msra.mxu0 %v112
    %262 = vmatpush.msra.mxu0 %v91
    %263 = vmatmul.f32.gmra.mxu0 %v245
    %v264 = vpop.f32.mrf.mxu0
    %v265 = vadd.f32 0.0, %v264
    %266 = vdwg.mxu0
    %267 = vmatpush.msra.mxu0 0.0
    %268 = vmatpush.msra.mxu0 0.0
    %269 = vmatpush.msra.mxu0 0.0
    %270 = vmatpush.msra.mxu0 0.0
    %271 = vmatpush.msra.mxu0 0.0
    %272 = vmatpush.msra.mxu0 0.0
    %273 = vmatpush.msra.mxu0 0.0
    %274 = vmatpush.msra.mxu0 %v239
    %275 = vmatpush.msra.mxu0 %v218
    %276 = vmatpush.msra.mxu0 %v197
    %277 = vmatpush.msra.mxu0 %v176
    %278 = vmatpush.msra.mxu0 %v61
    %279 = vmatpush.msra.mxu0 %v155
    %280 = vmatpush.msra.mxu0 %v134
    %281 = vmatpush.msra.mxu0 %v113
    %282 = vmatpush.msra.mxu0 %v92
    %283 = vmatmul.f32.gmra.mxu0 %v245
    %v284 = vpop.f32.mrf.mxu0
    %v285 = vadd.f32 0.0, %v284
    %286 = vdwg.mxu0
    %287 = vmatpush.msra.mxu0 0.0
    %288 = vmatpush.msra.mxu0 0.0
    %289 = vmatpush.msra.mxu0 0.0
    %290 = vmatpush.msra.mxu0 0.0
    %291 = vmatpush.msra.mxu0 0.0
    %292 = vmatpush.msra.mxu0 0.0
    %293 = vmatpush.msra.mxu0 0.0
    %294 = vmatpush.msra.mxu0 %v240
    %295 = vmatpush.msra.mxu0 %v219
    %296 = vmatpush.msra.mxu0 %v198
    %297 = vmatpush.msra.mxu0 %v177
    %298 = vmatpush.msra.mxu0 %v62
    %299 = vmatpush.msra.mxu0 %v156
    %300 = vmatpush.msra.mxu0 %v135
    %301 = vmatpush.msra.mxu0 %v114
    %302 = vmatpush.msra.mxu0 %v93
    %303 = vmatmul.f32.gmra.mxu0 %v245
    %v304 = vpop.f32.mrf.mxu0
    %v305 = vadd.f32 0.0, %v304
    %306 = vdwg.mxu0
    %307 = vmatpush.msra.mxu0 0.0
    %308 = vmatpush.msra.mxu0 0.0
    %309 = vmatpush.msra.mxu0 0.0
    %310 = vmatpush.msra.mxu0 0.0
    %311 = vmatpush.msra.mxu0 0.0
    %312 = vmatpush.msra.mxu0 0.0
    %313 = vmatpush.msra.mxu0 0.0
    %314 = vmatpush.msra.mxu0 %v241
    %315 = vmatpush.msra.mxu0 %v220
    %316 = vmatpush.msra.mxu0 %v199
    %317 = vmatpush.msra.mxu0 %v178
    %318 = vmatpush.msra.mxu0 %v63
    %319 = vmatpush.msra.mxu0 %v157
    %320 = vmatpush.msra.mxu0 %v136
    %321 = vmatpush.msra.mxu0 %v115
    %322 = vmatpush.msra.mxu0 %v94
    %323 = vmatmul.f32.gmra.mxu0 %v245
    %v324 = vpop.f32.mrf.mxu0
    %v325 = vadd.f32 0.0, %v324
    %326 = vdwg.mxu0
    %v327 = vadd.f32 %v265, %v285
    %v328 = vadd.f32 %v327, %v305
    %v329 = vadd.f32 %v328, %v325
    %330 = vadd.xlane.f32.xlu0 %v329
    %v331 = vpop.xlane.xlu0 %330
    %v332 = vrcp.pop 512.0
    %v333 = vmul.f32 512.0, %v332
    %v334 = vsub.f32 1.0, %v333
    %v335 = vmul.f32 %v332, %v334
    %v336 = vadd.f32 %v332, %v335
    %vm337 = vweird.f32 %v332
    %v338 = vsel %vm337, %v332, %v336
    %v339 = vmul.f32 %v331, %v338
    %v340 = vmul.f32 %v265, %v265
    %v341 = vmul.f32 %v285, %v285
    %v342 = vmul.f32 %v305, %v305
    %v343 = vmul.f32 %v325, %v325
    %v344 = vadd.f32 %v340, %v341
    %v345 = vadd.f32 %v344, %v342
    %v346 = vadd.f32 %v345, %v343
    %347 = vadd.xlane.f32.xlu0 %v346
    %v348 = vpop.xlane.xlu0 %347
    %v349 = vmul.f32 %v348, %v338
    %v350 = vmul.f32 %v339, %v339
    %v351 = vsub.f32 %v349, %v350
    %v352 = vld [vmem:[%s3] sm:$0xff]
    %v353 = vadd.f32 %v351, 1e-05
    %v354 = vrsqrt.pop %v353
    %v355 = vmul.f32 %v354, %v353
    %v356 = vmul.f32 %v355, %v354
    %v357 = vmul.f32 0.5, %v356
    %v358 = vsub.f32 1.5, %v357
    %v359 = vmul.f32 %v354, %v358
    %vm360 = vweird.f32 %v353
    %vm361 = vweird.f32 %v354
    %vm362 = vmor %vm360, %vm361
    %v363 = vsel %vm362, %v354, %v359
    %v364 = vmul.f32 %v352, %v363
    %v365 = vld [vmem:[%s4] sm:$0xff]
    %v366 = vmul.f32 %v339, %v364
    %v367 = vsub.f32 %v365, %v366
    %369 = vset.pattern.permute.xlu0 0
    %370 = vperm.xlu0 %369, %v364
    %v371 = vpop.permute.xlu0 %370
    %v373 = vmul.f32 %v265, %v371
    %v374 = vmul.f32 %v285, %v371
    %v375 = vmul.f32 %v305, %v371
    %v376 = vmul.f32 %v325, %v371
    %378 = vset.pattern.permute.xlu0 0
    %379 = vperm.xlu0 %378, %v367
    %v380 = vpop.permute.xlu0 %379
    %v382 = vadd.f32 %v373, %v380
    %v383 = vadd.f32 %v374, %v380
    %v384 = vadd.f32 %v375, %v380
    %v385 = vadd.f32 %v376, %v380
    %v386 = vmax.f32 %v382, 0.0
    %v387 = vmax.f32 %v383, 0.0
    %v388 = vmax.f32 %v384, 0.0
    %v389 = vmax.f32 %v385, 0.0
    %390 = vrot.lane.b32.xlu0 %v386, 17
    %v391 = vpop.permute.xlu0 %390
    %392 = vrot.lane.b32.xlu0 %v387, 17
    %v393 = vpop.permute.xlu0 %392
    %394 = vrot.lane.b32.xlu0 %v388, 17
    %v395 = vpop.permute.xlu0 %394
    %396 = vrot.lane.b32.xlu0 %v389, 17
    %v397 = vpop.permute.xlu0 %396
    %v398 = vsel %vm82, %v395, %v397
    %v399 = vsel %vm82, %v393, %v395
    %v400 = vsel %vm82, %v391, %v393
    %v401 = vsel %vm82, %v397, %v391
    %v402 = vmul.f32 %v401, %v87
    %v403 = vmul.f32 %v400, %v88
    %v404 = vmul.f32 %v399, %v89
    %v405 = vmul.f32 %v398, %v90
    %406 = vrot.lane.b32.xlu0 %v386, 16
    %v407 = vpop.permute.xlu0 %406
    %408 = vrot.lane.b32.xlu0 %v387, 16
    %v409 = vpop.permute.xlu0 %408
    %410 = vrot.lane.b32.xlu0 %v388, 16
    %v411 = vpop.permute.xlu0 %410
    %412 = vrot.lane.b32.xlu0 %v389, 16
    %v413 = vpop.permute.xlu0 %412
    %v414 = vsel %vm103, %v411, %v413
    %v415 = vsel %vm103, %v409, %v411
    %v416 = vsel %vm103, %v407, %v409
    %v417 = vsel %vm103, %v413, %v407
    %v418 = vmul.f32 %v417, %v108
    %v419 = vmul.f32 %v416, %v109
    %v420 = vmul.f32 %v415, %v110
    %v421 = vmul.f32 %v414, %v111
    %422 = vrot.lane.b32.xlu0 %v386, 15
    %v423 = vpop.permute.xlu0 %422
    %424 = vrot.lane.b32.xlu0 %v387, 15
    %v425 = vpop.permute.xlu0 %424
    %426 = vrot.lane.b32.xlu0 %v388, 15
    %v427 = vpop.permute.xlu0 %426
    %428 = vrot.lane.b32.xlu0 %v389, 15
    %v429 = vpop.permute.xlu0 %428
    %v430 = vsel %vm124, %v427, %v429
    %v431 = vsel %vm124, %v425, %v427
    %v432 = vsel %vm124, %v423, %v425
    %v433 = vsel %vm124, %v429, %v423
    %v434 = vmul.f32 %v433, %v129
    %v435 = vmul.f32 %v432, %v130
    %v436 = vmul.f32 %v431, %v131
    %v437 = vmul.f32 %v430, %v132
    %438 = vrot.lane.b32.xlu0 %v386, 1
    %v439 = vpop.permute.xlu0 %438
    %440 = vrot.lane.b32.xlu0 %v387, 1
    %v441 = vpop.permute.xlu0 %440
    %442 = vrot.lane.b32.xlu0 %v388, 1
    %v443 = vpop.permute.xlu0 %442
    %444 = vrot.lane.b32.xlu0 %v389, 1
    %v445 = vpop.permute.xlu0 %444
    %v446 = vsel %vm145, %v443, %v445
    %v447 = vsel %vm145, %v441, %v443
    %v448 = vsel %vm145, %v439, %v441
    %v449 = vsel %vm145, %v445, %v439
    %v450 = vmul.f32 %v449, %v150
    %v451 = vmul.f32 %v448, %v151
    %v452 = vmul.f32 %v447, %v152
    %v453 = vmul.f32 %v446, %v153
    %454 = vrot.lane.b32.xlu0 %v386, 127
    %v455 = vpop.permute.xlu0 %454
    %456 = vrot.lane.b32.xlu0 %v387, 127
    %v457 = vpop.permute.xlu0 %456
    %458 = vrot.lane.b32.xlu0 %v388, 127
    %v459 = vpop.permute.xlu0 %458
    %460 = vrot.lane.b32.xlu0 %v389, 127
    %v461 = vpop.permute.xlu0 %460
    %v462 = vsel %vm166, %v459, %v461
    %v463 = vsel %vm166, %v457, %v459
    %v464 = vsel %vm166, %v455, %v457
    %v465 = vsel %vm166, %v461, %v455
    %v466 = vmul.f32 %v464, %v171
    %v467 = vmul.f32 %v463, %v172
    %v468 = vmul.f32 %v462, %v173
    %v469 = vmul.f32 %v465, %v174
    %470 = vrot.lane.b32.xlu0 %v386, 113
    %v471 = vpop.permute.xlu0 %470
    %472 = vrot.lane.b32.xlu0 %v387, 113
    %v473 = vpop.permute.xlu0 %472
    %474 = vrot.lane.b32.xlu0 %v388, 113
    %v475 = vpop.permute.xlu0 %474
    %476 = vrot.lane.b32.xlu0 %v389, 113
    %v477 = vpop.permute.xlu0 %476
    %v478 = vsel %vm187, %v475, %v477
    %v479 = vsel %vm187, %v473, %v475
    %v480 = vsel %vm187, %v471, %v473
    %v481 = vsel %vm187, %v477, %v471
    %v482 = vmul.f32 %v480, %v192
    %v483 = vmul.f32 %v479, %v193
    %v484 = vmul.f32 %v478, %v194
    %v485 = vmul.f32 %v481, %v195
    %486 = vrot.lane.b32.xlu0 %v386, 112
    %v487 = vpop.permute.xlu0 %486
    %488 = vrot.lane.b32.xlu0 %v387, 112
    %v489 = vpop.permute.xlu0 %488
    %490 = vrot.lane.b32.xlu0 %v388, 112
    %v491 = vpop.permute.xlu0 %490
    %492 = vrot.lane.b32.xlu0 %v389, 112
    %v493 = vpop.permute.xlu0 %492
    %v494 = vsel %vm208, %v491, %v493
    %v495 = vsel %vm208, %v489, %v491
    %v496 = vsel %vm208, %v487, %v489
    %v497 = vsel %vm208, %v493, %v487
    %v498 = vmul.f32 %v496, %v213
    %v499 = vmul.f32 %v495, %v214
    %v500 = vmul.f32 %v494, %v215
    %v501 = vmul.f32 %v497, %v216
    %502 = vrot.lane.b32.xlu0 %v386, 111
    %v503 = vpop.permute.xlu0 %502
    %504 = vrot.lane.b32.xlu0 %v387, 111
    %v505 = vpop.permute.xlu0 %504
    %506 = vrot.lane.b32.xlu0 %v388, 111
    %v507 = vpop.permute.xlu0 %506
    %508 = vrot.lane.b32.xlu0 %v389, 111
    %v509 = vpop.permute.xlu0 %508
    %v510 = vsel %vm229, %v507, %v509
    %v511 = vsel %vm229, %v505, %v507
    %v512 = vsel %vm229, %v503, %v505
    %v513 = vsel %vm229, %v509, %v503
    %v514 = vmul.f32 %v512, %v234
    %v515 = vmul.f32 %v511, %v235
    %v516 = vmul.f32 %v510, %v236
    %v517 = vmul.f32 %v513, %v237
    %v518 = vld [vmem:[%s5] sm:$0xff]
    %v520 = vsel %vm243, %v518, 0
    %522 = vmatpush.msra.mxu0 0.0
    %523 = vmatpush.msra.mxu0 0.0
    %524 = vmatpush.msra.mxu0 0.0
    %525 = vmatpush.msra.mxu0 0.0
    %526 = vmatpush.msra.mxu0 0.0
    %527 = vmatpush.msra.mxu0 0.0
    %528 = vmatpush.msra.mxu0 0.0
    %529 = vmatpush.msra.mxu0 %v514
    %530 = vmatpush.msra.mxu0 %v498
    %531 = vmatpush.msra.mxu0 %v482
    %532 = vmatpush.msra.mxu0 %v466
    %533 = vmatpush.msra.mxu0 %v386
    %534 = vmatpush.msra.mxu0 %v450
    %535 = vmatpush.msra.mxu0 %v434
    %536 = vmatpush.msra.mxu0 %v418
    %537 = vmatpush.msra.mxu0 %v402
    %538 = vmatmul.f32.gmra.mxu0 %v520
    %v539 = vpop.f32.mrf.mxu0
    %v540 = vadd.f32 0.0, %v539
    %541 = vdwg.mxu0
    %542 = vmatpush.msra.mxu0 0.0
    %543 = vmatpush.msra.mxu0 0.0
    %544 = vmatpush.msra.mxu0 0.0
    %545 = vmatpush.msra.mxu0 0.0
    %546 = vmatpush.msra.mxu0 0.0
    %547 = vmatpush.msra.mxu0 0.0
    %548 = vmatpush.msra.mxu0 0.0
    %549 = vmatpush.msra.mxu0 %v515
    %550 = vmatpush.msra.mxu0 %v499
    %551 = vmatpush.msra.mxu0 %v483
    %552 = vmatpush.msra.mxu0 %v467
    %553 = vmatpush.msra.mxu0 %v387
    %554 = vmatpush.msra.mxu0 %v451
    %555 = vmatpush.msra.mxu0 %v435
    %556 = vmatpush.msra.mxu0 %v419
    %557 = vmatpush.msra.mxu0 %v403
    %558 = vmatmul.f32.gmra.mxu0 %v520
    %v559 = vpop.f32.mrf.mxu0
    %v560 = vadd.f32 0.0, %v559
    %561 = vdwg.mxu0
    %562 = vmatpush.msra.mxu0 0.0
    %563 = vmatpush.msra.mxu0 0.0
    %564 = vmatpush.msra.mxu0 0.0
    %565 = vmatpush.msra.mxu0 0.0
    %566 = vmatpush.msra.mxu0 0.0
    %567 = vmatpush.msra.mxu0 0.0
    %568 = vmatpush.msra.mxu0 0.0
    %569 = vmatpush.msra.mxu0 %v516
    %570 = vmatpush.msra.mxu0 %v500
    %571 = vmatpush.msra.mxu0 %v484
    %572 = vmatpush.msra.mxu0 %v468
    %573 = vmatpush.msra.mxu0 %v388
    %574 = vmatpush.msra.mxu0 %v452
    %575 = vmatpush.msra.mxu0 %v436
    %576 = vmatpush.msra.mxu0 %v420
    %577 = vmatpush.msra.mxu0 %v404
    %578 = vmatmul.f32.gmra.mxu0 %v520
    %v579 = vpop.f32.mrf.mxu0
    %v580 = vadd.f32 0.0, %v579
    %581 = vdwg.mxu0
    %582 = vmatpush.msra.mxu0 0.0
    %583 = vmatpush.msra.mxu0 0.0
    %584 = vmatpush.msra.mxu0 0.0
    %585 = vmatpush.msra.mxu0 0.0
    %586 = vmatpush.msra.mxu0 0.0
    %587 = vmatpush.msra.mxu0 0.0
    %588 = vmatpush.msra.mxu0 0.0
    %589 = vmatpush.msra.mxu0 %v517
    %590 = vmatpush.msra.mxu0 %v501
    %591 = vmatpush.msra.mxu0 %v485
    %592 = vmatpush.msra.mxu0 %v469
    %593 = vmatpush.msra.mxu0 %v389
    %594 = vmatpush.msra.mxu0 %v453
    %595 = vmatpush.msra.mxu0 %v437
    %596 = vmatpush.msra.mxu0 %v421
    %597 = vmatpush.msra.mxu0 %v405
    %598 = vmatmul.f32.gmra.mxu0 %v520
    %v599 = vpop.f32.mrf.mxu0
    %v600 = vadd.f32 0.0, %v599
    %601 = vdwg.mxu0
    %v602 = vadd.f32 %v540, %v560
    %v603 = vadd.f32 %v602, %v580
    %v604 = vadd.f32 %v603, %v600
    %605 = vadd.xlane.f32.xlu0 %v604
    %v606 = vpop.xlane.xlu0 %605
    %v607 = vmul.f32 %v606, %v338
    %v608 = vmul.f32 %v540, %v540
    %v609 = vmul.f32 %v560, %v560
    %v610 = vmul.f32 %v580, %v580
    %v611 = vmul.f32 %v600, %v600
    %v612 = vadd.f32 %v608, %v609
    %v613 = vadd.f32 %v612, %v610
    %v614 = vadd.f32 %v613, %v611
    %615 = vadd.xlane.f32.xlu0 %v614
    %v616 = vpop.xlane.xlu0 %615
    %v617 = vmul.f32 %v616, %v338
    %v618 = vmul.f32 %v607, %v607
    %v619 = vsub.f32 %v617, %v618
    %v620 = vld [vmem:[%s6] sm:$0xff]
    %v621 = vadd.f32 %v619, 1e-05
    %v622 = vrsqrt.pop %v621
    %v623 = vmul.f32 %v622, %v621
    %v624 = vmul.f32 %v623, %v622
    %v625 = vmul.f32 0.5, %v624
    %v626 = vsub.f32 1.5, %v625
    %v627 = vmul.f32 %v622, %v626
    %vm628 = vweird.f32 %v621
    %vm629 = vweird.f32 %v622
    %vm630 = vmor %vm628, %vm629
    %v631 = vsel %vm630, %v622, %v627
    %v632 = vmul.f32 %v620, %v631
    %v633 = vld [vmem:[%s7] sm:$0xff]
    %v634 = vmul.f32 %v607, %v632
    %v635 = vsub.f32 %v633, %v634
    %637 = vset.pattern.permute.xlu0 0
    %638 = vperm.xlu0 %637, %v632
    %v639 = vpop.permute.xlu0 %638
    %v641 = vmul.f32 %v540, %v639
    %v642 = vmul.f32 %v560, %v639
    %v643 = vmul.f32 %v580, %v639
    %v644 = vmul.f32 %v600, %v639
    %646 = vset.pattern.permute.xlu0 0
    %647 = vperm.xlu0 %646, %v635
    %v648 = vpop.permute.xlu0 %647
    %v650 = vadd.f32 %v641, %v648
    %v651 = vadd.f32 %v642, %v648
    %v652 = vadd.f32 %v643, %v648
    %v653 = vadd.f32 %v644, %v648
    %v654 = vadd.f32 %v650, %v60
    %v655 = vadd.f32 %v651, %v61
    %v656 = vadd.f32 %v652, %v62
    %v657 = vadd.f32 %v653, %v63
    %v658 = vmax.f32 %v654, 0.0
    %v659 = vmax.f32 %v655, 0.0
    %v660 = vmax.f32 %v656, 0.0
    %v661 = vmax.f32 %v657, 0.0
    %662 = vst [vmem:[#allocation7] sm:$0xff] %v658
    %663 = vst [vmem:[#allocation7 + $0x8] sm:$0xff] %v659
    %664 = vst [vmem:[#allocation7 + $0x10] sm:$0xff] %v660
    %665 = vst [vmem:[#allocation7 + $0x18] sm:$0xff] %v661
    // Predicated region
    $region42: #{tpu_custom_call.1} parent=1 // pred_check
      _
    $region43: #{tpu_custom_call.1} parent=1 // pred_check_branch
      %667 = sbr.rel (0) target = $region45
    $region44: #{tpu_custom_call.1} parent=1 // pred_region
      %669 = vsyncadd [#allocation4], 0
      %s671 = sshll.u32 [#allocation7], 4
      %s672 = int_to_ptr.vmem [resolvable:$true] %s671
      %s673 = sshll.u32 %s8, 4
      %s674 = int_to_ptr.hbm [resolvable:$true] %s673
      %676 = dma.vmem_to_hbm [thread:$0]  %s672, 512, %s674, [#allocation4]
    $region45: #{tpu_custom_call.1} parent=1 // pred_fallthru
      _
    // Predicated region
    $region46: #{tpu_custom_call.1} parent=1 // pred_check
      _
    $region47: #{tpu_custom_call.1} parent=1 // pred_check_branch
      %678 = sbr.rel (0) target = $region49
    $region48: #{tpu_custom_call.1} parent=1 // pred_region
      %680 = dma.done [#allocation4], 512
    $region49: #{tpu_custom_call.1} parent=1 // pred_fallthru
      _
    %681 = vsyncpa [#allocation3], 1
    %682 = vsyncpa [#allocation6], 1
    %683 = vsyncpa [#allocation4], 1

</llo_original>
